<compile_context>
chip_gen: v6e
topology: v6e:2x2x1
jax: 0.10.0
libtpu: 0.0.40
codegen_flags: <defaults>
</compile_context>

<pallas_src>
import math

import jax
import jax.numpy as jnp
from jax.experimental import pallas as pl
from jax.experimental.pallas import tpu as pltpu


def _triplet_kernel(x1_ref, x2_ref, x3_ref, w1_ref, b1_ref, w2_ref, b2_ref,
                    o1_ref, o2_ref, o3_ref):
    # Shared embedding_net parameters, VMEM-resident across the whole grid.
    w1 = w1_ref[...]          # (D, HID)        bf16
    b1 = b1_ref[...]          # (1, HID)        f32
    w2 = w2_ref[...]          # (HID, EMB_PAD)  bf16
    b2 = b2_ref[...]          # (1, EMB_PAD)    f32
    # Unrolled at trace time: same weights applied to each triplet member.
    for x_ref, o_ref in ((x1_ref, o1_ref), (x2_ref, o2_ref), (x3_ref, o3_ref)):
        x = x_ref[...].astype(jnp.bfloat16)                               # (TM, D)
        h = jnp.dot(x, w1, preferred_element_type=jnp.float32)            # MXU
        h = jnp.maximum(h + b1, 0.0)                                      # VPU
        out = jnp.dot(h.astype(jnp.bfloat16), w2,
                      preferred_element_type=jnp.float32)                 # MXU
        o_ref[...] = (out + b2).astype(o_ref.dtype)                       # (TM, EMB_PAD)


def triplet_net(x1, x2, x3, w1, b1, w2, b2):
    """Applies the shared embedding_net (Linear->ReLU->Linear) to x1, x2, x3."""
    B = x1.shape[0]
    D = math.prod(x1.shape[1:])
    HID = w1.shape[1]
    EMB = w2.shape[1]
    EMB_PAD = ((EMB + 127) // 128) * 128

    # Flatten NCHW -> (B, D): metadata-only row-major view (== torch x.view(B, -1)).
    x1f = x1.reshape(B, D)
    x2f = x2.reshape(B, D)
    x3f = x3.reshape(B, D)

    # Weights as bf16 MXU operands; biases stay f32. Zero-pad the EMB axis to a
    # multiple of 128 lanes for unmasked output stores (tiny, one-time cost).
    w1b = w1.astype(jnp.bfloat16)
    w2b = jnp.pad(w2.astype(jnp.bfloat16), ((0, 0), (0, EMB_PAD - EMB)))
    b1f = b1.reshape(1, HID).astype(jnp.float32)
    b2f = jnp.pad(b2.reshape(1, EMB).astype(jnp.float32),
                  ((0, 0), (0, EMB_PAD - EMB)))

    # M-axis tiling: biggest tile that keeps double-buffered VMEM modest
    # (3 inputs * 512*D*4B * 2 bufs ~= 12 MiB at D=1024, well under the 32 MiB
    # default scoped limit on v7x). If B <= 512 the tile equals the full batch
    # (allowed: block dim == full array dim). A ragged last tile (B > 512, not
    # a multiple of TM) is handled by Pallas OOB masking; there is no cross-row
    # reduction in this kernel so garbage rows never contaminate valid output.
    TM = min(512, B)
    grid = (pl.cdiv(B, TM),)

    x_spec = pl.BlockSpec((TM, D), lambda i: (i, 0))
    o_spec = pl.BlockSpec((TM, EMB_PAD), lambda i: (i, 0))
    w1_spec = pl.BlockSpec((D, HID), lambda i: (0, 0))
    b1_spec = pl.BlockSpec((1, HID), lambda i: (0, 0))
    w2_spec = pl.BlockSpec((HID, EMB_PAD), lambda i: (0, 0))
    b2_spec = pl.BlockSpec((1, EMB_PAD), lambda i: (0, 0))

    cost = pl.CostEstimate(
        flops=2 * 3 * B * D * HID + 2 * 3 * B * HID * EMB_PAD,
        transcendentals=0,
        bytes_accessed=(3 * B * D * x1.dtype.itemsize
                        + (D * HID + HID * EMB_PAD) * 2      # bf16 weights
                        + (HID + EMB_PAD) * 4                # f32 biases
                        + 3 * B * EMB_PAD * x1.dtype.itemsize),
    )

    o1, o2, o3 = pl.pallas_call(
        _triplet_kernel,
        out_shape=tuple(jax.ShapeDtypeStruct((B, EMB_PAD), x1.dtype)
                        for _ in range(3)),
        grid=grid,
        in_specs=[x_spec, x_spec, x_spec, w1_spec, b1_spec, w2_spec, b2_spec],
        out_specs=(o_spec, o_spec, o_spec),
        compiler_params=pltpu.CompilerParams(
            dimension_semantics=("parallel",)),
        cost_estimate=cost,
    )(x1f, x2f, x3f, w1b, b1f, w2b, b2f)

    # forward() returns (output1, output2, output3); drop the lane padding.
    return o1[:, :EMB], o2[:, :EMB], o3[:, :EMB]


def _reference(x, w1, b1, w2, b2):
    B = x.shape[0]
    xf = x.reshape(B, -1)
    h = jnp.maximum(xf @ w1 + b1.reshape(1, -1), 0.0)
    return h @ w2 + b2.reshape(1, -1)


if __name__ == "__main__":
    # Small shapes consistent with an NCHW conv-style input.
    B, C, H, W = 2, 4, 16, 16
    D = C * H * W          # 1024
    HID = 128
    EMB = 64

    key = jax.random.PRNGKey(0)
    k1, k2, k3, kw1, kb1, kw2, kb2 = jax.random.split(key, 7)

    x1 = jax.random.normal(k1, (B, C, H, W), dtype=jnp.float32)
    x2 = jax.random.normal(k2, (B, C, H, W), dtype=jnp.float32)
    x3 = jax.random.normal(k3, (B, C, H, W), dtype=jnp.float32)

    # Deterministic synthetic embedding_net parameters (shared across inputs).
    w1 = jax.random.normal(kw1, (D, HID), dtype=jnp.float32) * (1.0 / D ** 0.5)
    b1 = jax.random.normal(kb1, (1, HID), dtype=jnp.float32) * 0.01
    w2 = jax.random.normal(kw2, (HID, EMB), dtype=jnp.float32) * (1.0 / HID ** 0.5)
    b2 = jax.random.normal(kb2, (1, EMB), dtype=jnp.float32) * 0.01

    o1, o2, o3 = jax.block_until_ready(
        jax.jit(triplet_net)(x1, x2, x3, w1, b1, w2, b2))

    # Correctness check against a pure-f32 JAX reference of the same forward.
    # Tolerance loosened because MXU operands are bf16 (f32 accumulation).
    r1 = _reference(x1, w1, b1, w2, b2)
    r2 = _reference(x2, w1, b1, w2, b2)
    r3 = _reference(x3, w1, b1, w2, b2)
    assert o1.shape == (B, EMB) and o2.shape == (B, EMB) and o3.shape == (B, EMB)
    assert jnp.allclose(o1, r1, atol=5e-2, rtol=5e-2)
    assert jnp.allclose(o2, r2, atol=5e-2, rtol=5e-2)
    assert jnp.allclose(o3, r3, atol=5e-2, rtol=5e-2)

    print("KERNEL_OK")
</pallas_src>

<mosaic_0001>
module attributes {stable_mosaic.version = 11 : i64} {
  func.func @_triplet_kernel(%arg0: i32, %arg1: memref<2x1024xf32, #tpu.memory_space<vmem>>, %arg2: memref<2x1024xf32, #tpu.memory_space<vmem>>, %arg3: memref<2x1024xf32, #tpu.memory_space<vmem>>, %arg4: memref<1024x128xbf16, #tpu.memory_space<vmem>>, %arg5: memref<1x128xf32, #tpu.memory_space<vmem>>, %arg6: memref<128x128xbf16, #tpu.memory_space<vmem>>, %arg7: memref<1x128xf32, #tpu.memory_space<vmem>>, %arg8: memref<2x128xf32, #tpu.memory_space<vmem>>, %arg9: memref<2x128xf32, #tpu.memory_space<vmem>>, %arg10: memref<2x128xf32, #tpu.memory_space<vmem>>) attributes {dimension_semantics = [#tpu.dimension_semantics<parallel>], iteration_bounds = array<i64: 1>, scalar_prefetch = 0 : i64, scratch_operands = 0 : i64, tpu.core_type = #tpu.core_type<tc>, window_params = [{transform_indices = @transform_0, window_bounds = array<i64: 2, 1024>}, {transform_indices = @transform_1, window_bounds = array<i64: 2, 1024>}, {transform_indices = @transform_2, window_bounds = array<i64: 2, 1024>}, {pipeline_mode = #tpu.pipeline_mode<synchronous>, transform_indices = @transform_3, window_bounds = array<i64: 1024, 128>}, {pipeline_mode = #tpu.pipeline_mode<synchronous>, transform_indices = @transform_4, window_bounds = array<i64: 1, 128>}, {pipeline_mode = #tpu.pipeline_mode<synchronous>, transform_indices = @transform_5, window_bounds = array<i64: 128, 128>}, {pipeline_mode = #tpu.pipeline_mode<synchronous>, transform_indices = @transform_6, window_bounds = array<i64: 1, 128>}, {transform_indices = @transform_7, window_bounds = array<i64: 2, 128>}, {transform_indices = @transform_8, window_bounds = array<i64: 2, 128>}, {transform_indices = @transform_9, window_bounds = array<i64: 2, 128>}]} {
    %c0 = arith.constant 0 : index
    %c0_0 = arith.constant 0 : index
    %0 = vector.load %arg4[%c0, %c0_0] : memref<1024x128xbf16, #tpu.memory_space<vmem>>, vector<1024x128xbf16>
    %c0_1 = arith.constant 0 : index
    %c0_2 = arith.constant 0 : index
    %1 = vector.load %arg5[%c0_1, %c0_2] : memref<1x128xf32, #tpu.memory_space<vmem>>, vector<1x128xf32>
    %c0_3 = arith.constant 0 : index
    %c0_4 = arith.constant 0 : index
    %2 = vector.load %arg6[%c0_3, %c0_4] : memref<128x128xbf16, #tpu.memory_space<vmem>>, vector<128x128xbf16>
    %c0_5 = arith.constant 0 : index
    %c0_6 = arith.constant 0 : index
    %3 = vector.load %arg7[%c0_5, %c0_6] : memref<1x128xf32, #tpu.memory_space<vmem>>, vector<1x128xf32>
    %c0_7 = arith.constant 0 : index
    %c0_8 = arith.constant 0 : index
    %4 = vector.load %arg1[%c0_7, %c0_8] : memref<2x1024xf32, #tpu.memory_space<vmem>>, vector<2x1024xf32>
    %5 = arith.truncf %4 : vector<2x1024xf32> to vector<2x1024xbf16>
    %cst = arith.constant dense<0.000000e+00> : vector<2x128xf32>
    %6 = tpu.matmul %5, %0, %cst {dimension_numbers = #tpu.dot_dimension_numbers<[1], [0], [0], [1], [0, 0, 1, 1], [], []>} : vector<2x1024xbf16>, vector<1024x128xbf16>, vector<2x128xf32> -> vector<2x128xf32>
    %7 = vector.broadcast %1 : vector<1x128xf32> to vector<2x128xf32>
    %8 = arith.addf %6, %7 : vector<2x128xf32>
    %cst_9 = arith.constant 0.000000e+00 : f32
    %9 = vector.broadcast %cst_9 : f32 to vector<2x128xf32>
    %10 = arith.maximumf %8, %9 : vector<2x128xf32>
    %11 = arith.truncf %10 : vector<2x128xf32> to vector<2x128xbf16>
    %cst_10 = arith.constant dense<0.000000e+00> : vector<2x128xf32>
    %12 = tpu.matmul %11, %2, %cst_10 {dimension_numbers = #tpu.dot_dimension_numbers<[1], [0], [0], [1], [0, 0, 1, 1], [], []>} : vector<2x128xbf16>, vector<128x128xbf16>, vector<2x128xf32> -> vector<2x128xf32>
    %13 = vector.broadcast %3 : vector<1x128xf32> to vector<2x128xf32>
    %14 = arith.addf %12, %13 : vector<2x128xf32>
    %c0_11 = arith.constant 0 : index
    %c0_12 = arith.constant 0 : index
    %15 = vector.load %arg8[%c0_11, %c0_12] : memref<2x128xf32, #tpu.memory_space<vmem>>, vector<2x128xf32>
    tpu.vector_store %arg8[%c0_11, %c0_12], %14 {strides = array<i32>} : memref<2x128xf32, #tpu.memory_space<vmem>>, vector<2x128xf32>,
    %c0_13 = arith.constant 0 : index
    %c0_14 = arith.constant 0 : index
    %16 = vector.load %arg2[%c0_13, %c0_14] : memref<2x1024xf32, #tpu.memory_space<vmem>>, vector<2x1024xf32>
    %17 = arith.truncf %16 : vector<2x1024xf32> to vector<2x1024xbf16>
    %cst_15 = arith.constant dense<0.000000e+00> : vector<2x128xf32>
    %18 = tpu.matmul %17, %0, %cst_15 {dimension_numbers = #tpu.dot_dimension_numbers<[1], [0], [0], [1], [0, 0, 1, 1], [], []>} : vector<2x1024xbf16>, vector<1024x128xbf16>, vector<2x128xf32> -> vector<2x128xf32>
    %19 = vector.broadcast %1 : vector<1x128xf32> to vector<2x128xf32>
    %20 = arith.addf %18, %19 : vector<2x128xf32>
    %cst_16 = arith.constant 0.000000e+00 : f32
    %21 = vector.broadcast %cst_16 : f32 to vector<2x128xf32>
    %22 = arith.maximumf %20, %21 : vector<2x128xf32>
    %23 = arith.truncf %22 : vector<2x128xf32> to vector<2x128xbf16>
    %cst_17 = arith.constant dense<0.000000e+00> : vector<2x128xf32>
    %24 = tpu.matmul %23, %2, %cst_17 {dimension_numbers = #tpu.dot_dimension_numbers<[1], [0], [0], [1], [0, 0, 1, 1], [], []>} : vector<2x128xbf16>, vector<128x128xbf16>, vector<2x128xf32> -> vector<2x128xf32>
    %25 = vector.broadcast %3 : vector<1x128xf32> to vector<2x128xf32>
    %26 = arith.addf %24, %25 : vector<2x128xf32>
    %c0_18 = arith.constant 0 : index
    %c0_19 = arith.constant 0 : index
    %27 = vector.load %arg9[%c0_18, %c0_19] : memref<2x128xf32, #tpu.memory_space<vmem>>, vector<2x128xf32>
    tpu.vector_store %arg9[%c0_18, %c0_19], %26 {strides = array<i32>} : memref<2x128xf32, #tpu.memory_space<vmem>>, vector<2x128xf32>,
    %c0_20 = arith.constant 0 : index
    %c0_21 = arith.constant 0 : index
    %28 = vector.load %arg3[%c0_20, %c0_21] : memref<2x1024xf32, #tpu.memory_space<vmem>>, vector<2x1024xf32>
    %29 = arith.truncf %28 : vector<2x1024xf32> to vector<2x1024xbf16>
    %cst_22 = arith.constant dense<0.000000e+00> : vector<2x128xf32>
    %30 = tpu.matmul %29, %0, %cst_22 {dimension_numbers = #tpu.dot_dimension_numbers<[1], [0], [0], [1], [0, 0, 1, 1], [], []>} : vector<2x1024xbf16>, vector<1024x128xbf16>, vector<2x128xf32> -> vector<2x128xf32>
    %31 = vector.broadcast %1 : vector<1x128xf32> to vector<2x128xf32>
    %32 = arith.addf %30, %31 : vector<2x128xf32>
    %cst_23 = arith.constant 0.000000e+00 : f32
    %33 = vector.broadcast %cst_23 : f32 to vector<2x128xf32>
    %34 = arith.maximumf %32, %33 : vector<2x128xf32>
    %35 = arith.truncf %34 : vector<2x128xf32> to vector<2x128xbf16>
    %cst_24 = arith.constant dense<0.000000e+00> : vector<2x128xf32>
    %36 = tpu.matmul %35, %2, %cst_24 {dimension_numbers = #tpu.dot_dimension_numbers<[1], [0], [0], [1], [0, 0, 1, 1], [], []>} : vector<2x128xbf16>, vector<128x128xbf16>, vector<2x128xf32> -> vector<2x128xf32>
    %37 = vector.broadcast %3 : vector<1x128xf32> to vector<2x128xf32>
    %38 = arith.addf %36, %37 : vector<2x128xf32>
    %c0_25 = arith.constant 0 : index
    %c0_26 = arith.constant 0 : index
    %39 = vector.load %arg10[%c0_25, %c0_26] : memref<2x128xf32, #tpu.memory_space<vmem>>, vector<2x128xf32>
    tpu.vector_store %arg10[%c0_25, %c0_26], %38 {strides = array<i32>} : memref<2x128xf32, #tpu.memory_space<vmem>>, vector<2x128xf32>,
    return
  }
  func.func @transform_0(%arg0: i32) -> (i32, i32) {
    %c0_i32 = arith.constant 0 : i32
    %c0_i32_0 = arith.constant 0 : i32
    return %arg0, %c0_i32 : i32, i32
  }
  func.func @transform_1(%arg0: i32) -> (i32, i32) {
    %c0_i32 = arith.constant 0 : i32
    %c0_i32_0 = arith.constant 0 : i32
    return %arg0, %c0_i32 : i32, i32
  }
  func.func @transform_2(%arg0: i32) -> (i32, i32) {
    %c0_i32 = arith.constant 0 : i32
    %c0_i32_0 = arith.constant 0 : i32
    return %arg0, %c0_i32 : i32, i32
  }
  func.func @transform_3(%arg0: i32) -> (i32, i32) {
    %c0_i32 = arith.constant 0 : i32
    %c0_i32_0 = arith.constant 0 : i32
    %c0_i32_1 = arith.constant 0 : i32
    return %c0_i32, %c0_i32_0 : i32, i32
  }
  func.func @transform_4(%arg0: i32) -> (i32, i32) {
    %c0_i32 = arith.constant 0 : i32
    %c0_i32_0 = arith.constant 0 : i32
    %c0_i32_1 = arith.constant 0 : i32
    return %c0_i32, %c0_i32_0 : i32, i32
  }
  func.func @transform_5(%arg0: i32) -> (i32, i32) {
    %c0_i32 = arith.constant 0 : i32
    %c0_i32_0 = arith.constant 0 : i32
    %c0_i32_1 = arith.constant 0 : i32
    return %c0_i32, %c0_i32_0 : i32, i32
  }
  func.func @transform_6(%arg0: i32) -> (i32, i32) {
    %c0_i32 = arith.constant 0 : i32
    %c0_i32_0 = arith.constant 0 : i32
    %c0_i32_1 = arith.constant 0 : i32
    return %c0_i32, %c0_i32_0 : i32, i32
  }
  func.func @transform_7(%arg0: i32) -> (i32, i32) {
    %c0_i32 = arith.constant 0 : i32
    %c0_i32_0 = arith.constant 0 : i32
    return %arg0, %c0_i32 : i32, i32
  }
  func.func @transform_8(%arg0: i32) -> (i32, i32) {
    %c0_i32 = arith.constant 0 : i32
    %c0_i32_0 = arith.constant 0 : i32
    return %arg0, %c0_i32 : i32, i32
  }
  func.func @transform_9(%arg0: i32) -> (i32, i32) {
    %c0_i32 = arith.constant 0 : i32
    %c0_i32_0 = arith.constant 0 : i32
    return %arg0, %c0_i32 : i32, i32
  }
}

</mosaic_0001>

<llo_original>
// kernel: triplet_net.1
$region0: #{triplet_net.1}
  #allocation0 [shape = 'u32[]', space=smem, size = 0x4, offset = 0x4, fixed_abs, tag = 'smem constant byte address 0x4 - core index']
  #allocation1 [shape = 'u32[144,128]{1,0:T(1,128)}', space=vmem, size = 0x12000, scoped, tag = 'internal scratch']
  %s0 = inlined_call_operand.vmem [shape: f32[2,1024], index: 0, kind: input, shape index: {}]
  %s1 = inlined_call_operand.vmem [shape: f32[2,1024], index: 1, kind: input, shape index: {}]
  %s2 = inlined_call_operand.vmem [shape: f32[2,1024], index: 2, kind: input, shape index: {}]
  %s3 = inlined_call_operand.vmem [shape: bf16[1024,128], index: 3, kind: input, shape index: {}]
  %s4 = inlined_call_operand.vmem [shape: f32[1,128], index: 4, kind: input, shape index: {}]
  %s5 = inlined_call_operand.vmem [shape: bf16[128,128], index: 5, kind: input, shape index: {}]
  %s6 = inlined_call_operand.vmem [shape: f32[1,128], index: 6, kind: input, shape index: {}]
  %s7 = inlined_call_operand.hbm [shape: f32[2,128], index: 7, kind: output, shape index: {0}]
  %s8 = inlined_call_operand.hbm [shape: f32[2,128], index: 8, kind: output, shape index: {1}]
  %s9 = inlined_call_operand.hbm [shape: f32[2,128], index: 9, kind: output, shape index: {2}]
  %10 = xla_tuple %s7, %s8, %s9
  %s11 = sld [smem:[#allocation0]]
  $region54: #{triplet_net.1} parent=0
    _
  %s13 = ssub.s32 1, %s11
  %s14 = scalar_select 0, %s13, %s11
  $region1: #{triplet_net.1} parent=0
    #allocation2 [shape = 'u8[1024]{0}', space=vmem, size = 0x400, scoped, tag = 'output window, operand 0, single buffered']
    #allocation3 [shape = 's32[1]{0}', space=sflag, size = 0x4, scoped, tag = 'scoped memory for triplet_net.1']
    #allocation4 [shape = 'u8[1024]{0}', space=vmem, size = 0x400, scoped, tag = 'output window, operand 1, single buffered']
    #allocation5 [shape = 's32[1]{0}', space=sflag, size = 0x4, scoped, tag = 'scoped memory for triplet_net.1']
    #allocation6 [shape = 'u8[1024]{0}', space=vmem, size = 0x400, scoped, tag = 'output window, operand 2, single buffered']
    %15 = vsyncpa [#allocation3], 0
    %16 = vsyncpa [#allocation5], 0
    // Predicated region
    $region2: #{triplet_net.1} parent=1 // pred_check
      _
    $region3: #{triplet_net.1} parent=1 // pred_check_branch
      %18 = sbr.rel (0) target = $region5
    $region4: #{triplet_net.1} parent=1 // pred_region
      _
    $region5: #{triplet_net.1} parent=1 // pred_fallthru
      _
    // Predicated region
    $region6: #{triplet_net.1} parent=1 // pred_check
      _
    $region7: #{triplet_net.1} parent=1 // pred_check_branch
      %20 = sbr.rel (0) target = $region9
    $region8: #{triplet_net.1} parent=1 // pred_region
      _
    $region9: #{triplet_net.1} parent=1 // pred_fallthru
      _
    // Predicated region
    $region10: #{triplet_net.1} parent=1 // pred_check
      _
    $region11: #{triplet_net.1} parent=1 // pred_check_branch
      %22 = sbr.rel (0) target = $region13
    $region12: #{triplet_net.1} parent=1 // pred_region
      _
    $region13: #{triplet_net.1} parent=1 // pred_fallthru
      _
    // Predicated region
    $region14: #{triplet_net.1} parent=1 // pred_check
      _
    $region15: #{triplet_net.1} parent=1 // pred_check_branch
      %24 = sbr.rel (0) target = $region17
    $region16: #{triplet_net.1} parent=1 // pred_region
      _
    $region17: #{triplet_net.1} parent=1 // pred_fallthru
      _
    // Predicated region
    $region18: #{triplet_net.1} parent=1 // pred_check
      _
    $region19: #{triplet_net.1} parent=1 // pred_check_branch
      %26 = sbr.rel (0) target = $region21
    $region20: #{triplet_net.1} parent=1 // pred_region
      _
    $region21: #{triplet_net.1} parent=1 // pred_fallthru
      _
    // Predicated region
    $region22: #{triplet_net.1} parent=1 // pred_check
      _
    $region23: #{triplet_net.1} parent=1 // pred_check_branch
      %28 = sbr.rel (0) target = $region25
    $region24: #{triplet_net.1} parent=1 // pred_region
      _
    $region25: #{triplet_net.1} parent=1 // pred_fallthru
      _
    // Predicated region
    $region26: #{triplet_net.1} parent=1 // pred_check
      _
    $region27: #{triplet_net.1} parent=1 // pred_check_branch
      %30 = sbr.rel (0) target = $region29
    $region28: #{triplet_net.1} parent=1 // pred_region
      _
    $region29: #{triplet_net.1} parent=1 // pred_fallthru
      _
    %v32 = vld [vmem:[%s3] sm:$0xf]
    %v33 = vld [vmem:[%s3 + $0x4] sm:$0xf]
    %v34 = vld [vmem:[%s3 + $0x8] sm:$0xf]
    %v35 = vld [vmem:[%s3 + $0xc] sm:$0xf]
    %v36 = vld [vmem:[%s3 + $0x10] sm:$0xf]
    %v37 = vld [vmem:[%s3 + $0x14] sm:$0xf]
    %v38 = vld [vmem:[%s3 + $0x18] sm:$0xf]
    %v39 = vld [vmem:[%s3 + $0x1c] sm:$0xf]
    %v40 = vld [vmem:[%s3 + $0x20] sm:$0xf]
    %v41 = vld [vmem:[%s3 + $0x24] sm:$0xf]
    %v42 = vld [vmem:[%s3 + $0x28] sm:$0xf]
    %v43 = vld [vmem:[%s3 + $0x2c] sm:$0xf]
    %v44 = vld [vmem:[%s3 + $0x30] sm:$0xf]
    %v45 = vld [vmem:[%s3 + $0x34] sm:$0xf]
    %v46 = vld [vmem:[%s3 + $0x38] sm:$0xf]
    %v47 = vld [vmem:[%s3 + $0x3c] sm:$0xf]
    %v48 = vld [vmem:[%s3 + $0x40] sm:$0xf]
    %v49 = vld [vmem:[%s3 + $0x44] sm:$0xf]
    %v50 = vld [vmem:[%s3 + $0x48] sm:$0xf]
    %v51 = vld [vmem:[%s3 + $0x4c] sm:$0xf]
    %v52 = vld [vmem:[%s3 + $0x50] sm:$0xf]
    %v53 = vld [vmem:[%s3 + $0x54] sm:$0xf]
    %v54 = vld [vmem:[%s3 + $0x58] sm:$0xf]
    %v55 = vld [vmem:[%s3 + $0x5c] sm:$0xf]
    %v56 = vld [vmem:[%s3 + $0x60] sm:$0xf]
    %v57 = vld [vmem:[%s3 + $0x64] sm:$0xf]
    %v58 = vld [vmem:[%s3 + $0x68] sm:$0xf]
    %v59 = vld [vmem:[%s3 + $0x6c] sm:$0xf]
    %v60 = vld [vmem:[%s3 + $0x70] sm:$0xf]
    %v61 = vld [vmem:[%s3 + $0x74] sm:$0xf]
    %v62 = vld [vmem:[%s3 + $0x78] sm:$0xf]
    %v63 = vld [vmem:[%s3 + $0x7c] sm:$0xf]
    %v64 = vld [vmem:[%s3 + $0x80] sm:$0xf]
    %v65 = vld [vmem:[%s3 + $0x84] sm:$0xf]
    %v66 = vld [vmem:[%s3 + $0x88] sm:$0xf]
    %v67 = vld [vmem:[%s3 + $0x8c] sm:$0xf]
    %v68 = vld [vmem:[%s3 + $0x90] sm:$0xf]
    %v69 = vld [vmem:[%s3 + $0x94] sm:$0xf]
    %v70 = vld [vmem:[%s3 + $0x98] sm:$0xf]
    %v71 = vld [vmem:[%s3 + $0x9c] sm:$0xf]
    %v72 = vld [vmem:[%s3 + $0xa0] sm:$0xf]
    %v73 = vld [vmem:[%s3 + $0xa4] sm:$0xf]
    %v74 = vld [vmem:[%s3 + $0xa8] sm:$0xf]
    %v75 = vld [vmem:[%s3 + $0xac] sm:$0xf]
    %v76 = vld [vmem:[%s3 + $0xb0] sm:$0xf]
    %v77 = vld [vmem:[%s3 + $0xb4] sm:$0xf]
    %v78 = vld [vmem:[%s3 + $0xb8] sm:$0xf]
    %v79 = vld [vmem:[%s3 + $0xbc] sm:$0xf]
    %v80 = vld [vmem:[%s3 + $0xc0] sm:$0xf]
    %v81 = vld [vmem:[%s3 + $0xc4] sm:$0xf]
    %v82 = vld [vmem:[%s3 + $0xc8] sm:$0xf]
    %v83 = vld [vmem:[%s3 + $0xcc] sm:$0xf]
    %v84 = vld [vmem:[%s3 + $0xd0] sm:$0xf]
    %v85 = vld [vmem:[%s3 + $0xd4] sm:$0xf]
    %v86 = vld [vmem:[%s3 + $0xd8] sm:$0xf]
    %v87 = vld [vmem:[%s3 + $0xdc] sm:$0xf]
    %v88 = vld [vmem:[%s3 + $0xe0] sm:$0xf]
    %v89 = vld [vmem:[%s3 + $0xe4] sm:$0xf]
    %v90 = vld [vmem:[%s3 + $0xe8] sm:$0xf]
    %v91 = vld [vmem:[%s3 + $0xec] sm:$0xf]
    %v92 = vld [vmem:[%s3 + $0xf0] sm:$0xf]
    %v93 = vld [vmem:[%s3 + $0xf4] sm:$0xf]
    %v94 = vld [vmem:[%s3 + $0xf8] sm:$0xf]
    %v95 = vld [vmem:[%s3 + $0xfc] sm:$0xf]
    %v96 = vld [vmem:[%s3 + $0x100] sm:$0xf]
    %v97 = vld [vmem:[%s3 + $0x104] sm:$0xf]
    %v98 = vld [vmem:[%s3 + $0x108] sm:$0xf]
    %v99 = vld [vmem:[%s3 + $0x10c] sm:$0xf]
    %v100 = vld [vmem:[%s3 + $0x110] sm:$0xf]
    %v101 = vld [vmem:[%s3 + $0x114] sm:$0xf]
    %v102 = vld [vmem:[%s3 + $0x118] sm:$0xf]
    %v103 = vld [vmem:[%s3 + $0x11c] sm:$0xf]
    %v104 = vld [vmem:[%s3 + $0x120] sm:$0xf]
    %v105 = vld [vmem:[%s3 + $0x124] sm:$0xf]
    %v106 = vld [vmem:[%s3 + $0x128] sm:$0xf]
    %v107 = vld [vmem:[%s3 + $0x12c] sm:$0xf]
    %v108 = vld [vmem:[%s3 + $0x130] sm:$0xf]
    %v109 = vld [vmem:[%s3 + $0x134] sm:$0xf]
    %v110 = vld [vmem:[%s3 + $0x138] sm:$0xf]
    %v111 = vld [vmem:[%s3 + $0x13c] sm:$0xf]
    %v112 = vld [vmem:[%s3 + $0x140] sm:$0xf]
    %v113 = vld [vmem:[%s3 + $0x144] sm:$0xf]
    %v114 = vld [vmem:[%s3 + $0x148] sm:$0xf]
    %v115 = vld [vmem:[%s3 + $0x14c] sm:$0xf]
    %v116 = vld [vmem:[%s3 + $0x150] sm:$0xf]
    %v117 = vld [vmem:[%s3 + $0x154] sm:$0xf]
    %v118 = vld [vmem:[%s3 + $0x158] sm:$0xf]
    %v119 = vld [vmem:[%s3 + $0x15c] sm:$0xf]
    %v120 = vld [vmem:[%s3 + $0x160] sm:$0xf]
    %v121 = vld [vmem:[%s3 + $0x164] sm:$0xf]
    %v122 = vld [vmem:[%s3 + $0x168] sm:$0xf]
    %v123 = vld [vmem:[%s3 + $0x16c] sm:$0xf]
    %v124 = vld [vmem:[%s3 + $0x170] sm:$0xf]
    %v125 = vld [vmem:[%s3 + $0x174] sm:$0xf]
    %v126 = vld [vmem:[%s3 + $0x178] sm:$0xf]
    %v127 = vld [vmem:[%s3 + $0x17c] sm:$0xf]
    %v128 = vld [vmem:[%s3 + $0x180] sm:$0xf]
    %v129 = vld [vmem:[%s3 + $0x184] sm:$0xf]
    %v130 = vld [vmem:[%s3 + $0x188] sm:$0xf]
    %v131 = vld [vmem:[%s3 + $0x18c] sm:$0xf]
    %v132 = vld [vmem:[%s3 + $0x190] sm:$0xf]
    %v133 = vld [vmem:[%s3 + $0x194] sm:$0xf]
    %v134 = vld [vmem:[%s3 + $0x198] sm:$0xf]
    %v135 = vld [vmem:[%s3 + $0x19c] sm:$0xf]
    %v136 = vld [vmem:[%s3 + $0x1a0] sm:$0xf]
    %v137 = vld [vmem:[%s3 + $0x1a4] sm:$0xf]
    %v138 = vld [vmem:[%s3 + $0x1a8] sm:$0xf]
    %v139 = vld [vmem:[%s3 + $0x1ac] sm:$0xf]
    %v140 = vld [vmem:[%s3 + $0x1b0] sm:$0xf]
    %v141 = vld [vmem:[%s3 + $0x1b4] sm:$0xf]
    %v142 = vld [vmem:[%s3 + $0x1b8] sm:$0xf]
    %v143 = vld [vmem:[%s3 + $0x1bc] sm:$0xf]
    %v144 = vld [vmem:[%s3 + $0x1c0] sm:$0xf]
    %v145 = vld [vmem:[%s3 + $0x1c4] sm:$0xf]
    %v146 = vld [vmem:[%s3 + $0x1c8] sm:$0xf]
    %v147 = vld [vmem:[%s3 + $0x1cc] sm:$0xf]
    %v148 = vld [vmem:[%s3 + $0x1d0] sm:$0xf]
    %v149 = vld [vmem:[%s3 + $0x1d4] sm:$0xf]
    %v150 = vld [vmem:[%s3 + $0x1d8] sm:$0xf]
    %v151 = vld [vmem:[%s3 + $0x1dc] sm:$0xf]
    %v152 = vld [vmem:[%s3 + $0x1e0] sm:$0xf]
    %v153 = vld [vmem:[%s3 + $0x1e4] sm:$0xf]
    %v154 = vld [vmem:[%s3 + $0x1e8] sm:$0xf]
    %v155 = vld [vmem:[%s3 + $0x1ec] sm:$0xf]
    %v156 = vld [vmem:[%s3 + $0x1f0] sm:$0xf]
    %v157 = vld [vmem:[%s3 + $0x1f4] sm:$0xf]
    %v158 = vld [vmem:[%s3 + $0x1f8] sm:$0xf]
    %v159 = vld [vmem:[%s3 + $0x1fc] sm:$0xf]
    %v160 = vld [vmem:[%s4] sm:$0x1]
    %v161 = vld [vmem:[%s5] sm:$0xf]
    %v162 = vld [vmem:[%s5 + $0x4] sm:$0xf]
    %v163 = vld [vmem:[%s5 + $0x8] sm:$0xf]
    %v164 = vld [vmem:[%s5 + $0xc] sm:$0xf]
    %v165 = vld [vmem:[%s5 + $0x10] sm:$0xf]
    %v166 = vld [vmem:[%s5 + $0x14] sm:$0xf]
    %v167 = vld [vmem:[%s5 + $0x18] sm:$0xf]
    %v168 = vld [vmem:[%s5 + $0x1c] sm:$0xf]
    %v169 = vld [vmem:[%s5 + $0x20] sm:$0xf]
    %v170 = vld [vmem:[%s5 + $0x24] sm:$0xf]
    %v171 = vld [vmem:[%s5 + $0x28] sm:$0xf]
    %v172 = vld [vmem:[%s5 + $0x2c] sm:$0xf]
    %v173 = vld [vmem:[%s5 + $0x30] sm:$0xf]
    %v174 = vld [vmem:[%s5 + $0x34] sm:$0xf]
    %v175 = vld [vmem:[%s5 + $0x38] sm:$0xf]
    %v176 = vld [vmem:[%s5 + $0x3c] sm:$0xf]
    %v177 = vld [vmem:[%s6] sm:$0x1]
    %v178 = vld [vmem:[%s0] sm:$0xff]
    %v179 = vld [vmem:[%s0 + $0x8] sm:$0xff]
    %v182 = vcombine.high %v178, %v178
    %v184 = vunpack.c.l.s4 1983009808
    %v185 = vunpack.c.0.s8 %v184
    %v186 = vlaneseq
    %v187 = vshrl.u32 %v186, 7
    %v188 = vsub.s32 %v185, %v187
    %v189 = vrot.slane %v178, %v188
    %v191 = vunpack.c.l.s4 1983009808
    %v192 = vunpack.c.0.s8 %v191
    %v193 = vlaneseq
    %v194 = vshrl.u32 %v193, 7
    %v195 = vsub.s32 %v192, %v194
    %v196 = vrot.slane %v182, %v195
    %v197 = vcombine.high %v189, %v189
    %v198 = vcombine.high %v196, %v196
    %v199 = vcombine.high %v179, %v179
    %v201 = vunpack.c.l.s4 1983009808
    %v202 = vunpack.c.0.s8 %v201
    %v203 = vlaneseq
    %v204 = vshrl.u32 %v203, 7
    %v205 = vsub.s32 %v202, %v204
    %v206 = vrot.slane %v179, %v205
    %v208 = vunpack.c.l.s4 1983009808
    %v209 = vunpack.c.0.s8 %v208
    %v210 = vlaneseq
    %v211 = vshrl.u32 %v210, 7
    %v212 = vsub.s32 %v209, %v211
    %v213 = vrot.slane %v199, %v212
    %v214 = vcombine.high %v206, %v206
    %v215 = vcombine.high %v213, %v213
    %v224 = vpack.c.bf16 %v189, %v189
    %v225 = vpack.c.bf16 %v197, %v197
    %v226 = vpack.c.bf16 %v196, %v196
    %v227 = vpack.c.bf16 %v198, %v198
    %v228 = vpack.c.bf16 %v206, %v206
    %v229 = vpack.c.bf16 %v214, %v214
    %v230 = vpack.c.bf16 %v213, %v213
    %v231 = vpack.c.bf16 %v215, %v215
    %v233 = vlaneseq
    %v234 = vshrl.u32 %v233, 7
    %v235 = vsub.s32 0, %v234
    %v236 = vrot.slane %v160, %v235
    %v366 = vunpack.c.l.b16 %v32
    %v367 = vunpack.c.l.b16 %v33
    %v368 = vunpack.c.l.b16 %v34
    %v369 = vunpack.c.l.b16 %v35
    %v370 = vunpack.c.l.b16 %v36
    %v371 = vunpack.c.l.b16 %v37
    %v372 = vunpack.c.l.b16 %v38
    %v373 = vunpack.c.l.b16 %v39
    %v374 = vunpack.c.l.b16 %v40
    %v375 = vunpack.c.l.b16 %v41
    %v376 = vunpack.c.l.b16 %v42
    %v377 = vunpack.c.l.b16 %v43
    %v378 = vunpack.c.l.b16 %v44
    %v379 = vunpack.c.l.b16 %v45
    %v380 = vunpack.c.l.b16 %v46
    %v381 = vunpack.c.l.b16 %v47
    %v382 = vunpack.c.l.b16 %v48
    %v383 = vunpack.c.l.b16 %v49
    %v384 = vunpack.c.l.b16 %v50
    %v385 = vunpack.c.l.b16 %v51
    %v386 = vunpack.c.l.b16 %v52
    %v387 = vunpack.c.l.b16 %v53
    %v388 = vunpack.c.l.b16 %v54
    %v389 = vunpack.c.l.b16 %v55
    %v390 = vunpack.c.l.b16 %v56
    %v391 = vunpack.c.l.b16 %v57
    %v392 = vunpack.c.l.b16 %v58
    %v393 = vunpack.c.l.b16 %v59
    %v394 = vunpack.c.l.b16 %v60
    %v395 = vunpack.c.l.b16 %v61
    %v396 = vunpack.c.l.b16 %v62
    %v397 = vunpack.c.l.b16 %v63
    %v398 = vunpack.c.l.b16 %v64
    %v399 = vunpack.c.l.b16 %v65
    %v400 = vunpack.c.l.b16 %v66
    %v401 = vunpack.c.l.b16 %v67
    %v402 = vunpack.c.l.b16 %v68
    %v403 = vunpack.c.l.b16 %v69
    %v404 = vunpack.c.l.b16 %v70
    %v405 = vunpack.c.l.b16 %v71
    %v406 = vunpack.c.l.b16 %v72
    %v407 = vunpack.c.l.b16 %v73
    %v408 = vunpack.c.l.b16 %v74
    %v409 = vunpack.c.l.b16 %v75
    %v410 = vunpack.c.l.b16 %v76
    %v411 = vunpack.c.l.b16 %v77
    %v412 = vunpack.c.l.b16 %v78
    %v413 = vunpack.c.l.b16 %v79
    %v414 = vunpack.c.l.b16 %v80
    %v415 = vunpack.c.l.b16 %v81
    %v416 = vunpack.c.l.b16 %v82
    %v417 = vunpack.c.l.b16 %v83
    %v418 = vunpack.c.l.b16 %v84
    %v419 = vunpack.c.l.b16 %v85
    %v420 = vunpack.c.l.b16 %v86
    %v421 = vunpack.c.l.b16 %v87
    %v422 = vunpack.c.l.b16 %v88
    %v423 = vunpack.c.l.b16 %v89
    %v424 = vunpack.c.l.b16 %v90
    %v425 = vunpack.c.l.b16 %v91
    %v426 = vunpack.c.l.b16 %v92
    %v427 = vunpack.c.l.b16 %v93
    %v428 = vunpack.c.l.b16 %v94
    %v429 = vunpack.c.l.b16 %v95
    %v430 = vunpack.c.l.b16 %v96
    %v431 = vunpack.c.l.b16 %v97
    %v432 = vunpack.c.l.b16 %v98
    %v433 = vunpack.c.l.b16 %v99
    %v434 = vunpack.c.l.b16 %v100
    %v435 = vunpack.c.l.b16 %v101
    %v436 = vunpack.c.l.b16 %v102
    %v437 = vunpack.c.l.b16 %v103
    %v438 = vunpack.c.l.b16 %v104
    %v439 = vunpack.c.l.b16 %v105
    %v440 = vunpack.c.l.b16 %v106
    %v441 = vunpack.c.l.b16 %v107
    %v442 = vunpack.c.l.b16 %v108
    %v443 = vunpack.c.l.b16 %v109
    %v444 = vunpack.c.l.b16 %v110
    %v445 = vunpack.c.l.b16 %v111
    %v446 = vunpack.c.l.b16 %v112
    %v447 = vunpack.c.l.b16 %v113
    %v448 = vunpack.c.l.b16 %v114
    %v449 = vunpack.c.l.b16 %v115
    %v450 = vunpack.c.l.b16 %v116
    %v451 = vunpack.c.l.b16 %v117
    %v452 = vunpack.c.l.b16 %v118
    %v453 = vunpack.c.l.b16 %v119
    %v454 = vunpack.c.l.b16 %v120
    %v455 = vunpack.c.l.b16 %v121
    %v456 = vunpack.c.l.b16 %v122
    %v457 = vunpack.c.l.b16 %v123
    %v458 = vunpack.c.l.b16 %v124
    %v459 = vunpack.c.l.b16 %v125
    %v460 = vunpack.c.l.b16 %v126
    %v461 = vunpack.c.l.b16 %v127
    %v462 = vunpack.c.l.b16 %v128
    %v463 = vunpack.c.l.b16 %v129
    %v464 = vunpack.c.l.b16 %v130
    %v465 = vunpack.c.l.b16 %v131
    %v466 = vunpack.c.l.b16 %v132
    %v467 = vunpack.c.l.b16 %v133
    %v468 = vunpack.c.l.b16 %v134
    %v469 = vunpack.c.l.b16 %v135
    %v470 = vunpack.c.l.b16 %v136
    %v471 = vunpack.c.l.b16 %v137
    %v472 = vunpack.c.l.b16 %v138
    %v473 = vunpack.c.l.b16 %v139
    %v474 = vunpack.c.l.b16 %v140
    %v475 = vunpack.c.l.b16 %v141
    %v476 = vunpack.c.l.b16 %v142
    %v477 = vunpack.c.l.b16 %v143
    %v478 = vunpack.c.l.b16 %v144
    %v479 = vunpack.c.l.b16 %v145
    %v480 = vunpack.c.l.b16 %v146
    %v481 = vunpack.c.l.b16 %v147
    %v482 = vunpack.c.l.b16 %v148
    %v483 = vunpack.c.l.b16 %v149
    %v484 = vunpack.c.l.b16 %v150
    %v485 = vunpack.c.l.b16 %v151
    %v486 = vunpack.c.l.b16 %v152
    %v487 = vunpack.c.l.b16 %v153
    %v488 = vunpack.c.l.b16 %v154
    %v489 = vunpack.c.l.b16 %v155
    %v490 = vunpack.c.l.b16 %v156
    %v491 = vunpack.c.l.b16 %v157
    %v492 = vunpack.c.l.b16 %v158
    %v493 = vunpack.c.l.b16 %v159
    %v494 = vpack.c.b16 %v367, %v366
    %v495 = vpack.c.b16 %v369, %v368
    %v496 = vpack.c.b16 %v371, %v370
    %v497 = vpack.c.b16 %v373, %v372
    %v498 = vpack.c.b16 %v375, %v374
    %v499 = vpack.c.b16 %v377, %v376
    %v500 = vpack.c.b16 %v379, %v378
    %v501 = vpack.c.b16 %v381, %v380
    %v502 = vpack.c.b16 %v383, %v382
    %v503 = vpack.c.b16 %v385, %v384
    %v504 = vpack.c.b16 %v387, %v386
    %v505 = vpack.c.b16 %v389, %v388
    %v506 = vpack.c.b16 %v391, %v390
    %v507 = vpack.c.b16 %v393, %v392
    %v508 = vpack.c.b16 %v395, %v394
    %v509 = vpack.c.b16 %v397, %v396
    %v510 = vpack.c.b16 %v399, %v398
    %v511 = vpack.c.b16 %v401, %v400
    %v512 = vpack.c.b16 %v403, %v402
    %v513 = vpack.c.b16 %v405, %v404
    %v514 = vpack.c.b16 %v407, %v406
    %v515 = vpack.c.b16 %v409, %v408
    %v516 = vpack.c.b16 %v411, %v410
    %v517 = vpack.c.b16 %v413, %v412
    %v518 = vpack.c.b16 %v415, %v414
    %v519 = vpack.c.b16 %v417, %v416
    %v520 = vpack.c.b16 %v419, %v418
    %v521 = vpack.c.b16 %v421, %v420
    %v522 = vpack.c.b16 %v423, %v422
    %v523 = vpack.c.b16 %v425, %v424
    %v524 = vpack.c.b16 %v427, %v426
    %v525 = vpack.c.b16 %v429, %v428
    %v526 = vpack.c.b16 %v431, %v430
    %v527 = vpack.c.b16 %v433, %v432
    %v528 = vpack.c.b16 %v435, %v434
    %v529 = vpack.c.b16 %v437, %v436
    %v530 = vpack.c.b16 %v439, %v438
    %v531 = vpack.c.b16 %v441, %v440
    %v532 = vpack.c.b16 %v443, %v442
    %v533 = vpack.c.b16 %v445, %v444
    %v534 = vpack.c.b16 %v447, %v446
    %v535 = vpack.c.b16 %v449, %v448
    %v536 = vpack.c.b16 %v451, %v450
    %v537 = vpack.c.b16 %v453, %v452
    %v538 = vpack.c.b16 %v455, %v454
    %v539 = vpack.c.b16 %v457, %v456
    %v540 = vpack.c.b16 %v459, %v458
    %v541 = vpack.c.b16 %v461, %v460
    %v542 = vpack.c.b16 %v463, %v462
    %v543 = vpack.c.b16 %v465, %v464
    %v544 = vpack.c.b16 %v467, %v466
    %v545 = vpack.c.b16 %v469, %v468
    %v546 = vpack.c.b16 %v471, %v470
    %v547 = vpack.c.b16 %v473, %v472
    %v548 = vpack.c.b16 %v475, %v474
    %v549 = vpack.c.b16 %v477, %v476
    %v550 = vpack.c.b16 %v479, %v478
    %v551 = vpack.c.b16 %v481, %v480
    %v552 = vpack.c.b16 %v483, %v482
    %v553 = vpack.c.b16 %v485, %v484
    %v554 = vpack.c.b16 %v487, %v486
    %v555 = vpack.c.b16 %v489, %v488
    %v556 = vpack.c.b16 %v491, %v490
    %v557 = vpack.c.b16 %v493, %v492
    %622 = vmatprep.subr.bf16.mxu0 0
    %623 = vmatpush1.bf16.msra.mxu0 %v501
    %624 = vmatprep.subr.bf16.mxu0 0
    %625 = vmatpush1.bf16.msra.mxu0 %v500
    %626 = vmatprep.subr.bf16.mxu0 0
    %627 = vmatpush1.bf16.msra.mxu0 %v499
    %628 = vmatprep.subr.bf16.mxu0 0
    %629 = vmatpush1.bf16.msra.mxu0 %v498
    %630 = vmatprep.subr.bf16.mxu0 0
    %631 = vmatpush1.bf16.msra.mxu0 %v497
    %632 = vmatprep.subr.bf16.mxu0 0
    %633 = vmatpush1.bf16.msra.mxu0 %v496
    %634 = vmatprep.subr.bf16.mxu0 0
    %635 = vmatpush1.bf16.msra.mxu0 %v495
    %636 = vmatprep.subr.bf16.mxu0 0
    %637 = vmatpush1.bf16.msra.mxu0 %v494
    %638 = vmatprep.subr.bf16.mxu0 0
    %639 = vmatpush2.bf16.msra.mxu0 %v509
    %640 = vmatprep.subr.bf16.mxu0 0
    %641 = vmatpush2.bf16.msra.mxu0 %v508
    %642 = vmatprep.subr.bf16.mxu0 0
    %643 = vmatpush2.bf16.msra.mxu0 %v507
    %644 = vmatprep.subr.bf16.mxu0 0
    %645 = vmatpush2.bf16.msra.mxu0 %v506
    %646 = vmatprep.subr.bf16.mxu0 0
    %647 = vmatpush2.bf16.msra.mxu0 %v505
    %648 = vmatprep.subr.bf16.mxu0 0
    %649 = vmatpush2.bf16.msra.mxu0 %v504
    %650 = vmatprep.subr.bf16.mxu0 0
    %651 = vmatpush2.bf16.msra.mxu0 %v503
    %652 = vmatprep.subr.bf16.mxu0 0
    %653 = vmatpush2.bf16.msra.mxu0 %v502
    %654 = vmatprep.mubr.bf16.mxu0 %v225
    %655 = vmatmul.mubr.bf16.gmra.mxu0 %v224
    %v656 = vpop.f32.mrf.mxu0
    %v657 = vadd.f32 %v236, %v656
    %v658 = vpop.f32.mrf.mxu0
    %v659 = vpop.f32.mrf.mxu0
    %v660 = vpop.f32.mrf.mxu0
    %661 = vdwg.mxu0
    %662 = vmatprep.subr.bf16.mxu0 0
    %663 = vmatpush1.bf16.msra.mxu0 %v517
    %664 = vmatprep.subr.bf16.mxu0 0
    %665 = vmatpush1.bf16.msra.mxu0 %v516
    %666 = vmatprep.subr.bf16.mxu0 0
    %667 = vmatpush1.bf16.msra.mxu0 %v515
    %668 = vmatprep.subr.bf16.mxu0 0
    %669 = vmatpush1.bf16.msra.mxu0 %v514
    %670 = vmatprep.subr.bf16.mxu0 0
    %671 = vmatpush1.bf16.msra.mxu0 %v513
    %672 = vmatprep.subr.bf16.mxu0 0
    %673 = vmatpush1.bf16.msra.mxu0 %v512
    %674 = vmatprep.subr.bf16.mxu0 0
    %675 = vmatpush1.bf16.msra.mxu0 %v511
    %676 = vmatprep.subr.bf16.mxu0 0
    %677 = vmatpush1.bf16.msra.mxu0 %v510
    %678 = vmatprep.subr.bf16.mxu0 0
    %679 = vmatpush2.bf16.msra.mxu0 %v525
    %680 = vmatprep.subr.bf16.mxu0 0
    %681 = vmatpush2.bf16.msra.mxu0 %v524
    %682 = vmatprep.subr.bf16.mxu0 0
    %683 = vmatpush2.bf16.msra.mxu0 %v523
    %684 = vmatprep.subr.bf16.mxu0 0
    %685 = vmatpush2.bf16.msra.mxu0 %v522
    %686 = vmatprep.subr.bf16.mxu0 0
    %687 = vmatpush2.bf16.msra.mxu0 %v521
    %688 = vmatprep.subr.bf16.mxu0 0
    %689 = vmatpush2.bf16.msra.mxu0 %v520
    %690 = vmatprep.subr.bf16.mxu0 0
    %691 = vmatpush2.bf16.msra.mxu0 %v519
    %692 = vmatprep.subr.bf16.mxu0 0
    %693 = vmatpush2.bf16.msra.mxu0 %v518
    %694 = vmatprep.mubr.bf16.mxu0 %v227
    %695 = vmatmul.mubr.bf16.gmra.mxu0 %v226
    %v696 = vpop.f32.mrf.mxu0
    %v697 = vadd.f32 %v657, %v696
    %v698 = vpop.f32.mrf.mxu0
    %v699 = vpop.f32.mrf.mxu0
    %v700 = vpop.f32.mrf.mxu0
    %701 = vdwg.mxu0
    %702 = vmatprep.subr.bf16.mxu0 0
    %703 = vmatpush1.bf16.msra.mxu0 %v533
    %704 = vmatprep.subr.bf16.mxu0 0
    %705 = vmatpush1.bf16.msra.mxu0 %v532
    %706 = vmatprep.subr.bf16.mxu0 0
    %707 = vmatpush1.bf16.msra.mxu0 %v531
    %708 = vmatprep.subr.bf16.mxu0 0
    %709 = vmatpush1.bf16.msra.mxu0 %v530
    %710 = vmatprep.subr.bf16.mxu0 0
    %711 = vmatpush1.bf16.msra.mxu0 %v529
    %712 = vmatprep.subr.bf16.mxu0 0
    %713 = vmatpush1.bf16.msra.mxu0 %v528
    %714 = vmatprep.subr.bf16.mxu0 0
    %715 = vmatpush1.bf16.msra.mxu0 %v527
    %716 = vmatprep.subr.bf16.mxu0 0
    %717 = vmatpush1.bf16.msra.mxu0 %v526
    %718 = vmatprep.subr.bf16.mxu0 0
    %719 = vmatpush2.bf16.msra.mxu0 %v541
    %720 = vmatprep.subr.bf16.mxu0 0
    %721 = vmatpush2.bf16.msra.mxu0 %v540
    %722 = vmatprep.subr.bf16.mxu0 0
    %723 = vmatpush2.bf16.msra.mxu0 %v539
    %724 = vmatprep.subr.bf16.mxu0 0
    %725 = vmatpush2.bf16.msra.mxu0 %v538
    %726 = vmatprep.subr.bf16.mxu0 0
    %727 = vmatpush2.bf16.msra.mxu0 %v537
    %728 = vmatprep.subr.bf16.mxu0 0
    %729 = vmatpush2.bf16.msra.mxu0 %v536
    %730 = vmatprep.subr.bf16.mxu0 0
    %731 = vmatpush2.bf16.msra.mxu0 %v535
    %732 = vmatprep.subr.bf16.mxu0 0
    %733 = vmatpush2.bf16.msra.mxu0 %v534
    %734 = vmatprep.mubr.bf16.mxu0 %v229
    %735 = vmatmul.mubr.bf16.gmra.mxu0 %v228
    %v736 = vpop.f32.mrf.mxu0
    %v737 = vadd.f32 %v697, %v736
    %v738 = vpop.f32.mrf.mxu0
    %v739 = vpop.f32.mrf.mxu0
    %v740 = vpop.f32.mrf.mxu0
    %741 = vdwg.mxu0
    %742 = vmatprep.subr.bf16.mxu0 0
    %743 = vmatpush1.bf16.msra.mxu0 %v549
    %744 = vmatprep.subr.bf16.mxu0 0
    %745 = vmatpush1.bf16.msra.mxu0 %v548
    %746 = vmatprep.subr.bf16.mxu0 0
    %747 = vmatpush1.bf16.msra.mxu0 %v547
    %748 = vmatprep.subr.bf16.mxu0 0
    %749 = vmatpush1.bf16.msra.mxu0 %v546
    %750 = vmatprep.subr.bf16.mxu0 0
    %751 = vmatpush1.bf16.msra.mxu0 %v545
    %752 = vmatprep.subr.bf16.mxu0 0
    %753 = vmatpush1.bf16.msra.mxu0 %v544
    %754 = vmatprep.subr.bf16.mxu0 0
    %755 = vmatpush1.bf16.msra.mxu0 %v543
    %756 = vmatprep.subr.bf16.mxu0 0
    %757 = vmatpush1.bf16.msra.mxu0 %v542
    %758 = vmatprep.subr.bf16.mxu0 0
    %759 = vmatpush2.bf16.msra.mxu0 %v557
    %760 = vmatprep.subr.bf16.mxu0 0
    %761 = vmatpush2.bf16.msra.mxu0 %v556
    %762 = vmatprep.subr.bf16.mxu0 0
    %763 = vmatpush2.bf16.msra.mxu0 %v555
    %764 = vmatprep.subr.bf16.mxu0 0
    %765 = vmatpush2.bf16.msra.mxu0 %v554
    %766 = vmatprep.subr.bf16.mxu0 0
    %767 = vmatpush2.bf16.msra.mxu0 %v553
    %768 = vmatprep.subr.bf16.mxu0 0
    %769 = vmatpush2.bf16.msra.mxu0 %v552
    %770 = vmatprep.subr.bf16.mxu0 0
    %771 = vmatpush2.bf16.msra.mxu0 %v551
    %772 = vmatprep.subr.bf16.mxu0 0
    %773 = vmatpush2.bf16.msra.mxu0 %v550
    %774 = vmatprep.mubr.bf16.mxu0 %v231
    %775 = vmatmul.mubr.bf16.gmra.mxu0 %v230
    %v776 = vpop.f32.mrf.mxu0
    %v777 = vadd.f32 %v737, %v776
    %v778 = vpop.f32.mrf.mxu0
    %v779 = vpop.f32.mrf.mxu0
    %v780 = vpop.f32.mrf.mxu0
    %781 = vdwg.mxu0
    %v782 = vmax.f32 %v777, 0.0
    %v783 = vpack.c.bf16 %v782, %v782
    %v785 = vlaneseq
    %v786 = vshrl.u32 %v785, 7
    %v787 = vsub.s32 0, %v786
    %v788 = vrot.slane %v177, %v787
    %v806 = vunpack.c.l.b16 %v161
    %v807 = vunpack.c.l.b16 %v162
    %v808 = vunpack.c.l.b16 %v163
    %v809 = vunpack.c.l.b16 %v164
    %v810 = vunpack.c.l.b16 %v165
    %v811 = vunpack.c.l.b16 %v166
    %v812 = vunpack.c.l.b16 %v167
    %v813 = vunpack.c.l.b16 %v168
    %v814 = vunpack.c.l.b16 %v169
    %v815 = vunpack.c.l.b16 %v170
    %v816 = vunpack.c.l.b16 %v171
    %v817 = vunpack.c.l.b16 %v172
    %v818 = vunpack.c.l.b16 %v173
    %v819 = vunpack.c.l.b16 %v174
    %v820 = vunpack.c.l.b16 %v175
    %v821 = vunpack.c.l.b16 %v176
    %v822 = vpack.c.b16 %v807, %v806
    %v823 = vpack.c.b16 %v809, %v808
    %v824 = vpack.c.b16 %v811, %v810
    %v825 = vpack.c.b16 %v813, %v812
    %v826 = vpack.c.b16 %v815, %v814
    %v827 = vpack.c.b16 %v817, %v816
    %v828 = vpack.c.b16 %v819, %v818
    %v829 = vpack.c.b16 %v821, %v820
    %838 = vmatprep.subr.bf16.mxu0 0
    %839 = vmatpush1.bf16.msra.mxu0 %v829
    %840 = vmatprep.subr.bf16.mxu0 0
    %841 = vmatpush1.bf16.msra.mxu0 %v828
    %842 = vmatprep.subr.bf16.mxu0 0
    %843 = vmatpush1.bf16.msra.mxu0 %v827
    %844 = vmatprep.subr.bf16.mxu0 0
    %845 = vmatpush1.bf16.msra.mxu0 %v826
    %846 = vmatprep.subr.bf16.mxu0 0
    %847 = vmatpush1.bf16.msra.mxu0 %v825
    %848 = vmatprep.subr.bf16.mxu0 0
    %849 = vmatpush1.bf16.msra.mxu0 %v824
    %850 = vmatprep.subr.bf16.mxu0 0
    %851 = vmatpush1.bf16.msra.mxu0 %v823
    %852 = vmatprep.subr.bf16.mxu0 0
    %853 = vmatpush1.bf16.msra.mxu0 %v822
    %854 = vmatprep.subr.bf16.mxu0 0
    %855 = vmatpush2.bf16.msra.mxu0 0
    %856 = vmatprep.subr.bf16.mxu0 0
    %857 = vmatpush2.bf16.msra.mxu0 0
    %858 = vmatprep.subr.bf16.mxu0 0
    %859 = vmatpush2.bf16.msra.mxu0 0
    %860 = vmatprep.subr.bf16.mxu0 0
    %861 = vmatpush2.bf16.msra.mxu0 0
    %862 = vmatprep.subr.bf16.mxu0 0
    %863 = vmatpush2.bf16.msra.mxu0 0
    %864 = vmatprep.subr.bf16.mxu0 0
    %865 = vmatpush2.bf16.msra.mxu0 0
    %866 = vmatprep.subr.bf16.mxu0 0
    %867 = vmatpush2.bf16.msra.mxu0 0
    %868 = vmatprep.subr.bf16.mxu0 0
    %869 = vmatpush2.bf16.msra.mxu0 0
    %870 = vmatprep.mubr.bf16.mxu0 0
    %871 = vmatmul.mubr.bf16.gmra.mxu0 %v783
    %v872 = vpop.f32.mrf.mxu0
    %v873 = vadd.f32 %v788, %v872
    %v874 = vpop.f32.mrf.mxu0
    %v875 = vpop.f32.mrf.mxu0
    %v876 = vpop.f32.mrf.mxu0
    %877 = vdwg.mxu0
    %878 = vst [vmem:[#allocation2] sm:$0x3] %v873
    %v879 = vld [vmem:[%s1] sm:$0xff]
    %v880 = vld [vmem:[%s1 + $0x8] sm:$0xff]
    %v883 = vcombine.high %v879, %v879
    %v885 = vunpack.c.l.s4 1983009808
    %v886 = vunpack.c.0.s8 %v885
    %v887 = vlaneseq
    %v888 = vshrl.u32 %v887, 7
    %v889 = vsub.s32 %v886, %v888
    %v890 = vrot.slane %v879, %v889
    %v892 = vunpack.c.l.s4 1983009808
    %v893 = vunpack.c.0.s8 %v892
    %v894 = vlaneseq
    %v895 = vshrl.u32 %v894, 7
    %v896 = vsub.s32 %v893, %v895
    %v897 = vrot.slane %v883, %v896
    %v898 = vcombine.high %v890, %v890
    %v899 = vcombine.high %v897, %v897
    %v900 = vcombine.high %v880, %v880
    %v902 = vunpack.c.l.s4 1983009808
    %v903 = vunpack.c.0.s8 %v902
    %v904 = vlaneseq
    %v905 = vshrl.u32 %v904, 7
    %v906 = vsub.s32 %v903, %v905
    %v907 = vrot.slane %v880, %v906
    %v909 = vunpack.c.l.s4 1983009808
    %v910 = vunpack.c.0.s8 %v909
    %v911 = vlaneseq
    %v912 = vshrl.u32 %v911, 7
    %v913 = vsub.s32 %v910, %v912
    %v914 = vrot.slane %v900, %v913
    %v915 = vcombine.high %v907, %v907
    %v916 = vcombine.high %v914, %v914
    %v925 = vpack.c.bf16 %v890, %v890
    %v926 = vpack.c.bf16 %v898, %v898
    %v927 = vpack.c.bf16 %v897, %v897
    %v928 = vpack.c.bf16 %v899, %v899
    %v929 = vpack.c.bf16 %v907, %v907
    %v930 = vpack.c.bf16 %v915, %v915
    %v931 = vpack.c.bf16 %v914, %v914
    %v932 = vpack.c.bf16 %v916, %v916
    %933 = vmatprep.subr.bf16.mxu0 0
    %934 = vmatpush1.bf16.msra.mxu0 %v501
    %935 = vmatprep.subr.bf16.mxu0 0
    %936 = vmatpush1.bf16.msra.mxu0 %v500
    %937 = vmatprep.subr.bf16.mxu0 0
    %938 = vmatpush1.bf16.msra.mxu0 %v499
    %939 = vmatprep.subr.bf16.mxu0 0
    %940 = vmatpush1.bf16.msra.mxu0 %v498
    %941 = vmatprep.subr.bf16.mxu0 0
    %942 = vmatpush1.bf16.msra.mxu0 %v497
    %943 = vmatprep.subr.bf16.mxu0 0
    %944 = vmatpush1.bf16.msra.mxu0 %v496
    %945 = vmatprep.subr.bf16.mxu0 0
    %946 = vmatpush1.bf16.msra.mxu0 %v495
    %947 = vmatprep.subr.bf16.mxu0 0
    %948 = vmatpush1.bf16.msra.mxu0 %v494
    %949 = vmatprep.subr.bf16.mxu0 0
    %950 = vmatpush2.bf16.msra.mxu0 %v509
    %951 = vmatprep.subr.bf16.mxu0 0
    %952 = vmatpush2.bf16.msra.mxu0 %v508
    %953 = vmatprep.subr.bf16.mxu0 0
    %954 = vmatpush2.bf16.msra.mxu0 %v507
    %955 = vmatprep.subr.bf16.mxu0 0
    %956 = vmatpush2.bf16.msra.mxu0 %v506
    %957 = vmatprep.subr.bf16.mxu0 0
    %958 = vmatpush2.bf16.msra.mxu0 %v505
    %959 = vmatprep.subr.bf16.mxu0 0
    %960 = vmatpush2.bf16.msra.mxu0 %v504
    %961 = vmatprep.subr.bf16.mxu0 0
    %962 = vmatpush2.bf16.msra.mxu0 %v503
    %963 = vmatprep.subr.bf16.mxu0 0
    %964 = vmatpush2.bf16.msra.mxu0 %v502
    %965 = vmatprep.mubr.bf16.mxu0 %v926
    %966 = vmatmul.mubr.bf16.gmra.mxu0 %v925
    %v967 = vpop.f32.mrf.mxu0
    %v968 = vadd.f32 %v236, %v967
    %v969 = vpop.f32.mrf.mxu0
    %v970 = vpop.f32.mrf.mxu0
    %v971 = vpop.f32.mrf.mxu0
    %972 = vdwg.mxu0
    %973 = vmatprep.subr.bf16.mxu0 0
    %974 = vmatpush1.bf16.msra.mxu0 %v517
    %975 = vmatprep.subr.bf16.mxu0 0
    %976 = vmatpush1.bf16.msra.mxu0 %v516
    %977 = vmatprep.subr.bf16.mxu0 0
    %978 = vmatpush1.bf16.msra.mxu0 %v515
    %979 = vmatprep.subr.bf16.mxu0 0
    %980 = vmatpush1.bf16.msra.mxu0 %v514
    %981 = vmatprep.subr.bf16.mxu0 0
    %982 = vmatpush1.bf16.msra.mxu0 %v513
    %983 = vmatprep.subr.bf16.mxu0 0
    %984 = vmatpush1.bf16.msra.mxu0 %v512
    %985 = vmatprep.subr.bf16.mxu0 0
    %986 = vmatpush1.bf16.msra.mxu0 %v511
    %987 = vmatprep.subr.bf16.mxu0 0
    %988 = vmatpush1.bf16.msra.mxu0 %v510
    %989 = vmatprep.subr.bf16.mxu0 0
    %990 = vmatpush2.bf16.msra.mxu0 %v525
    %991 = vmatprep.subr.bf16.mxu0 0
    %992 = vmatpush2.bf16.msra.mxu0 %v524
    %993 = vmatprep.subr.bf16.mxu0 0
    %994 = vmatpush2.bf16.msra.mxu0 %v523
    %995 = vmatprep.subr.bf16.mxu0 0
    %996 = vmatpush2.bf16.msra.mxu0 %v522
    %997 = vmatprep.subr.bf16.mxu0 0
    %998 = vmatpush2.bf16.msra.mxu0 %v521
    %999 = vmatprep.subr.bf16.mxu0 0
    %1000 = vmatpush2.bf16.msra.mxu0 %v520
    %1001 = vmatprep.subr.bf16.mxu0 0
    %1002 = vmatpush2.bf16.msra.mxu0 %v519
    %1003 = vmatprep.subr.bf16.mxu0 0
    %1004 = vmatpush2.bf16.msra.mxu0 %v518
    %1005 = vmatprep.mubr.bf16.mxu0 %v928
    %1006 = vmatmul.mubr.bf16.gmra.mxu0 %v927
    %v1007 = vpop.f32.mrf.mxu0
    %v1008 = vadd.f32 %v968, %v1007
    %v1009 = vpop.f32.mrf.mxu0
    %v1010 = vpop.f32.mrf.mxu0
    %v1011 = vpop.f32.mrf.mxu0
    %1012 = vdwg.mxu0
    %1013 = vmatprep.subr.bf16.mxu0 0
    %1014 = vmatpush1.bf16.msra.mxu0 %v533
    %1015 = vmatprep.subr.bf16.mxu0 0
    %1016 = vmatpush1.bf16.msra.mxu0 %v532
    %1017 = vmatprep.subr.bf16.mxu0 0
    %1018 = vmatpush1.bf16.msra.mxu0 %v531
    %1019 = vmatprep.subr.bf16.mxu0 0
    %1020 = vmatpush1.bf16.msra.mxu0 %v530
    %1021 = vmatprep.subr.bf16.mxu0 0
    %1022 = vmatpush1.bf16.msra.mxu0 %v529
    %1023 = vmatprep.subr.bf16.mxu0 0
    %1024 = vmatpush1.bf16.msra.mxu0 %v528
    %1025 = vmatprep.subr.bf16.mxu0 0
    %1026 = vmatpush1.bf16.msra.mxu0 %v527
    %1027 = vmatprep.subr.bf16.mxu0 0
    %1028 = vmatpush1.bf16.msra.mxu0 %v526
    %1029 = vmatprep.subr.bf16.mxu0 0
    %1030 = vmatpush2.bf16.msra.mxu0 %v541
    %1031 = vmatprep.subr.bf16.mxu0 0
    %1032 = vmatpush2.bf16.msra.mxu0 %v540
    %1033 = vmatprep.subr.bf16.mxu0 0
    %1034 = vmatpush2.bf16.msra.mxu0 %v539
    %1035 = vmatprep.subr.bf16.mxu0 0
    %1036 = vmatpush2.bf16.msra.mxu0 %v538
    %1037 = vmatprep.subr.bf16.mxu0 0
    %1038 = vmatpush2.bf16.msra.mxu0 %v537
    %1039 = vmatprep.subr.bf16.mxu0 0
    %1040 = vmatpush2.bf16.msra.mxu0 %v536
    %1041 = vmatprep.subr.bf16.mxu0 0
    %1042 = vmatpush2.bf16.msra.mxu0 %v535
    %1043 = vmatprep.subr.bf16.mxu0 0
    %1044 = vmatpush2.bf16.msra.mxu0 %v534
    %1045 = vmatprep.mubr.bf16.mxu0 %v930
    %1046 = vmatmul.mubr.bf16.gmra.mxu0 %v929
    %v1047 = vpop.f32.mrf.mxu0
    %v1048 = vadd.f32 %v1008, %v1047
    %v1049 = vpop.f32.mrf.mxu0
    %v1050 = vpop.f32.mrf.mxu0
    %v1051 = vpop.f32.mrf.mxu0
    %1052 = vdwg.mxu0
    %1053 = vmatprep.subr.bf16.mxu0 0
    %1054 = vmatpush1.bf16.msra.mxu0 %v549
    %1055 = vmatprep.subr.bf16.mxu0 0
    %1056 = vmatpush1.bf16.msra.mxu0 %v548
    %1057 = vmatprep.subr.bf16.mxu0 0
    %1058 = vmatpush1.bf16.msra.mxu0 %v547
    %1059 = vmatprep.subr.bf16.mxu0 0
    %1060 = vmatpush1.bf16.msra.mxu0 %v546
    %1061 = vmatprep.subr.bf16.mxu0 0
    %1062 = vmatpush1.bf16.msra.mxu0 %v545
    %1063 = vmatprep.subr.bf16.mxu0 0
    %1064 = vmatpush1.bf16.msra.mxu0 %v544
    %1065 = vmatprep.subr.bf16.mxu0 0
    %1066 = vmatpush1.bf16.msra.mxu0 %v543
    %1067 = vmatprep.subr.bf16.mxu0 0
    %1068 = vmatpush1.bf16.msra.mxu0 %v542
    %1069 = vmatprep.subr.bf16.mxu0 0
    %1070 = vmatpush2.bf16.msra.mxu0 %v557
    %1071 = vmatprep.subr.bf16.mxu0 0
    %1072 = vmatpush2.bf16.msra.mxu0 %v556
    %1073 = vmatprep.subr.bf16.mxu0 0
    %1074 = vmatpush2.bf16.msra.mxu0 %v555
    %1075 = vmatprep.subr.bf16.mxu0 0
    %1076 = vmatpush2.bf16.msra.mxu0 %v554
    %1077 = vmatprep.subr.bf16.mxu0 0
    %1078 = vmatpush2.bf16.msra.mxu0 %v553
    %1079 = vmatprep.subr.bf16.mxu0 0
    %1080 = vmatpush2.bf16.msra.mxu0 %v552
    %1081 = vmatprep.subr.bf16.mxu0 0
    %1082 = vmatpush2.bf16.msra.mxu0 %v551
    %1083 = vmatprep.subr.bf16.mxu0 0
    %1084 = vmatpush2.bf16.msra.mxu0 %v550
    %1085 = vmatprep.mubr.bf16.mxu0 %v932
    %1086 = vmatmul.mubr.bf16.gmra.mxu0 %v931
    %v1087 = vpop.f32.mrf.mxu0
    %v1088 = vadd.f32 %v1048, %v1087
    %v1089 = vpop.f32.mrf.mxu0
    %v1090 = vpop.f32.mrf.mxu0
    %v1091 = vpop.f32.mrf.mxu0
    %1092 = vdwg.mxu0
    %v1093 = vmax.f32 %v1088, 0.0
    %v1094 = vpack.c.bf16 %v1093, %v1093
    %1095 = vmatprep.subr.bf16.mxu0 0
    %1096 = vmatpush1.bf16.msra.mxu0 %v829
    %1097 = vmatprep.subr.bf16.mxu0 0
    %1098 = vmatpush1.bf16.msra.mxu0 %v828
    %1099 = vmatprep.subr.bf16.mxu0 0
    %1100 = vmatpush1.bf16.msra.mxu0 %v827
    %1101 = vmatprep.subr.bf16.mxu0 0
    %1102 = vmatpush1.bf16.msra.mxu0 %v826
    %1103 = vmatprep.subr.bf16.mxu0 0
    %1104 = vmatpush1.bf16.msra.mxu0 %v825
    %1105 = vmatprep.subr.bf16.mxu0 0
    %1106 = vmatpush1.bf16.msra.mxu0 %v824
    %1107 = vmatprep.subr.bf16.mxu0 0
    %1108 = vmatpush1.bf16.msra.mxu0 %v823
    %1109 = vmatprep.subr.bf16.mxu0 0
    %1110 = vmatpush1.bf16.msra.mxu0 %v822
    %1111 = vmatprep.subr.bf16.mxu0 0
    %1112 = vmatpush2.bf16.msra.mxu0 0
    %1113 = vmatprep.subr.bf16.mxu0 0
    %1114 = vmatpush2.bf16.msra.mxu0 0
    %1115 = vmatprep.subr.bf16.mxu0 0
    %1116 = vmatpush2.bf16.msra.mxu0 0
    %1117 = vmatprep.subr.bf16.mxu0 0
    %1118 = vmatpush2.bf16.msra.mxu0 0
    %1119 = vmatprep.subr.bf16.mxu0 0
    %1120 = vmatpush2.bf16.msra.mxu0 0
    %1121 = vmatprep.subr.bf16.mxu0 0
    %1122 = vmatpush2.bf16.msra.mxu0 0
    %1123 = vmatprep.subr.bf16.mxu0 0
    %1124 = vmatpush2.bf16.msra.mxu0 0
    %1125 = vmatprep.subr.bf16.mxu0 0
    %1126 = vmatpush2.bf16.msra.mxu0 0
    %1127 = vmatprep.mubr.bf16.mxu0 0
    %1128 = vmatmul.mubr.bf16.gmra.mxu0 %v1094
    %v1129 = vpop.f32.mrf.mxu0
    %v1130 = vadd.f32 %v788, %v1129
    %v1131 = vpop.f32.mrf.mxu0
    %v1132 = vpop.f32.mrf.mxu0
    %v1133 = vpop.f32.mrf.mxu0
    %1134 = vdwg.mxu0
    %1135 = vst [vmem:[#allocation4] sm:$0x3] %v1130
    %v1136 = vld [vmem:[%s2] sm:$0xff]
    %v1137 = vld [vmem:[%s2 + $0x8] sm:$0xff]
    %v1140 = vcombine.high %v1136, %v1136
    %v1142 = vunpack.c.l.s4 1983009808
    %v1143 = vunpack.c.0.s8 %v1142
    %v1144 = vlaneseq
    %v1145 = vshrl.u32 %v1144, 7
    %v1146 = vsub.s32 %v1143, %v1145
    %v1147 = vrot.slane %v1136, %v1146
    %v1149 = vunpack.c.l.s4 1983009808
    %v1150 = vunpack.c.0.s8 %v1149
    %v1151 = vlaneseq
    %v1152 = vshrl.u32 %v1151, 7
    %v1153 = vsub.s32 %v1150, %v1152
    %v1154 = vrot.slane %v1140, %v1153
    %v1155 = vcombine.high %v1147, %v1147
    %v1156 = vcombine.high %v1154, %v1154
    %v1157 = vcombine.high %v1137, %v1137
    %v1159 = vunpack.c.l.s4 1983009808
    %v1160 = vunpack.c.0.s8 %v1159
    %v1161 = vlaneseq
    %v1162 = vshrl.u32 %v1161, 7
    %v1163 = vsub.s32 %v1160, %v1162
    %v1164 = vrot.slane %v1137, %v1163
    %v1166 = vunpack.c.l.s4 1983009808
    %v1167 = vunpack.c.0.s8 %v1166
    %v1168 = vlaneseq
    %v1169 = vshrl.u32 %v1168, 7
    %v1170 = vsub.s32 %v1167, %v1169
    %v1171 = vrot.slane %v1157, %v1170
    %v1172 = vcombine.high %v1164, %v1164
    %v1173 = vcombine.high %v1171, %v1171
    %v1182 = vpack.c.bf16 %v1147, %v1147
    %v1183 = vpack.c.bf16 %v1155, %v1155
    %v1184 = vpack.c.bf16 %v1154, %v1154
    %v1185 = vpack.c.bf16 %v1156, %v1156
    %v1186 = vpack.c.bf16 %v1164, %v1164
    %v1187 = vpack.c.bf16 %v1172, %v1172
    %v1188 = vpack.c.bf16 %v1171, %v1171
    %v1189 = vpack.c.bf16 %v1173, %v1173
    %1190 = vmatprep.subr.bf16.mxu0 0
    %1191 = vmatpush1.bf16.msra.mxu0 %v501
    %1192 = vmatprep.subr.bf16.mxu0 0
    %1193 = vmatpush1.bf16.msra.mxu0 %v500
    %1194 = vmatprep.subr.bf16.mxu0 0
    %1195 = vmatpush1.bf16.msra.mxu0 %v499
    %1196 = vmatprep.subr.bf16.mxu0 0
    %1197 = vmatpush1.bf16.msra.mxu0 %v498
    %1198 = vmatprep.subr.bf16.mxu0 0
    %1199 = vmatpush1.bf16.msra.mxu0 %v497
    %1200 = vmatprep.subr.bf16.mxu0 0
    %1201 = vmatpush1.bf16.msra.mxu0 %v496
    %1202 = vmatprep.subr.bf16.mxu0 0
    %1203 = vmatpush1.bf16.msra.mxu0 %v495
    %1204 = vmatprep.subr.bf16.mxu0 0
    %1205 = vmatpush1.bf16.msra.mxu0 %v494
    %1206 = vmatprep.subr.bf16.mxu0 0
    %1207 = vmatpush2.bf16.msra.mxu0 %v509
    %1208 = vmatprep.subr.bf16.mxu0 0
    %1209 = vmatpush2.bf16.msra.mxu0 %v508
    %1210 = vmatprep.subr.bf16.mxu0 0
    %1211 = vmatpush2.bf16.msra.mxu0 %v507
    %1212 = vmatprep.subr.bf16.mxu0 0
    %1213 = vmatpush2.bf16.msra.mxu0 %v506
    %1214 = vmatprep.subr.bf16.mxu0 0
    %1215 = vmatpush2.bf16.msra.mxu0 %v505
    %1216 = vmatprep.subr.bf16.mxu0 0
    %1217 = vmatpush2.bf16.msra.mxu0 %v504
    %1218 = vmatprep.subr.bf16.mxu0 0
    %1219 = vmatpush2.bf16.msra.mxu0 %v503
    %1220 = vmatprep.subr.bf16.mxu0 0
    %1221 = vmatpush2.bf16.msra.mxu0 %v502
    %1222 = vmatprep.mubr.bf16.mxu0 %v1183
    %1223 = vmatmul.mubr.bf16.gmra.mxu0 %v1182
    %v1224 = vpop.f32.mrf.mxu0
    %v1225 = vadd.f32 %v236, %v1224
    %v1226 = vpop.f32.mrf.mxu0
    %v1227 = vpop.f32.mrf.mxu0
    %v1228 = vpop.f32.mrf.mxu0
    %1229 = vdwg.mxu0
    %1230 = vmatprep.subr.bf16.mxu0 0
    %1231 = vmatpush1.bf16.msra.mxu0 %v517
    %1232 = vmatprep.subr.bf16.mxu0 0
    %1233 = vmatpush1.bf16.msra.mxu0 %v516
    %1234 = vmatprep.subr.bf16.mxu0 0
    %1235 = vmatpush1.bf16.msra.mxu0 %v515
    %1236 = vmatprep.subr.bf16.mxu0 0
    %1237 = vmatpush1.bf16.msra.mxu0 %v514
    %1238 = vmatprep.subr.bf16.mxu0 0
    %1239 = vmatpush1.bf16.msra.mxu0 %v513
    %1240 = vmatprep.subr.bf16.mxu0 0
    %1241 = vmatpush1.bf16.msra.mxu0 %v512
    %1242 = vmatprep.subr.bf16.mxu0 0
    %1243 = vmatpush1.bf16.msra.mxu0 %v511
    %1244 = vmatprep.subr.bf16.mxu0 0
    %1245 = vmatpush1.bf16.msra.mxu0 %v510
    %1246 = vmatprep.subr.bf16.mxu0 0
    %1247 = vmatpush2.bf16.msra.mxu0 %v525
    %1248 = vmatprep.subr.bf16.mxu0 0
    %1249 = vmatpush2.bf16.msra.mxu0 %v524
    %1250 = vmatprep.subr.bf16.mxu0 0
    %1251 = vmatpush2.bf16.msra.mxu0 %v523
    %1252 = vmatprep.subr.bf16.mxu0 0
    %1253 = vmatpush2.bf16.msra.mxu0 %v522
    %1254 = vmatprep.subr.bf16.mxu0 0
    %1255 = vmatpush2.bf16.msra.mxu0 %v521
    %1256 = vmatprep.subr.bf16.mxu0 0
    %1257 = vmatpush2.bf16.msra.mxu0 %v520
    %1258 = vmatprep.subr.bf16.mxu0 0
    %1259 = vmatpush2.bf16.msra.mxu0 %v519
    %1260 = vmatprep.subr.bf16.mxu0 0
    %1261 = vmatpush2.bf16.msra.mxu0 %v518
    %1262 = vmatprep.mubr.bf16.mxu0 %v1185
    %1263 = vmatmul.mubr.bf16.gmra.mxu0 %v1184
    %v1264 = vpop.f32.mrf.mxu0
    %v1265 = vadd.f32 %v1225, %v1264
    %v1266 = vpop.f32.mrf.mxu0
    %v1267 = vpop.f32.mrf.mxu0
    %v1268 = vpop.f32.mrf.mxu0
    %1269 = vdwg.mxu0
    %1270 = vmatprep.subr.bf16.mxu0 0
    %1271 = vmatpush1.bf16.msra.mxu0 %v533
    %1272 = vmatprep.subr.bf16.mxu0 0
    %1273 = vmatpush1.bf16.msra.mxu0 %v532
    %1274 = vmatprep.subr.bf16.mxu0 0
    %1275 = vmatpush1.bf16.msra.mxu0 %v531
    %1276 = vmatprep.subr.bf16.mxu0 0
    %1277 = vmatpush1.bf16.msra.mxu0 %v530
    %1278 = vmatprep.subr.bf16.mxu0 0
    %1279 = vmatpush1.bf16.msra.mxu0 %v529
    %1280 = vmatprep.subr.bf16.mxu0 0
    %1281 = vmatpush1.bf16.msra.mxu0 %v528
    %1282 = vmatprep.subr.bf16.mxu0 0
    %1283 = vmatpush1.bf16.msra.mxu0 %v527
    %1284 = vmatprep.subr.bf16.mxu0 0
    %1285 = vmatpush1.bf16.msra.mxu0 %v526
    %1286 = vmatprep.subr.bf16.mxu0 0
    %1287 = vmatpush2.bf16.msra.mxu0 %v541
    %1288 = vmatprep.subr.bf16.mxu0 0
    %1289 = vmatpush2.bf16.msra.mxu0 %v540
    %1290 = vmatprep.subr.bf16.mxu0 0
    %1291 = vmatpush2.bf16.msra.mxu0 %v539
    %1292 = vmatprep.subr.bf16.mxu0 0
    %1293 = vmatpush2.bf16.msra.mxu0 %v538
    %1294 = vmatprep.subr.bf16.mxu0 0
    %1295 = vmatpush2.bf16.msra.mxu0 %v537
    %1296 = vmatprep.subr.bf16.mxu0 0
    %1297 = vmatpush2.bf16.msra.mxu0 %v536
    %1298 = vmatprep.subr.bf16.mxu0 0
    %1299 = vmatpush2.bf16.msra.mxu0 %v535
    %1300 = vmatprep.subr.bf16.mxu0 0
    %1301 = vmatpush2.bf16.msra.mxu0 %v534
    %1302 = vmatprep.mubr.bf16.mxu0 %v1187
    %1303 = vmatmul.mubr.bf16.gmra.mxu0 %v1186
    %v1304 = vpop.f32.mrf.mxu0
    %v1305 = vadd.f32 %v1265, %v1304
    %v1306 = vpop.f32.mrf.mxu0
    %v1307 = vpop.f32.mrf.mxu0
    %v1308 = vpop.f32.mrf.mxu0
    %1309 = vdwg.mxu0
    %1310 = vmatprep.subr.bf16.mxu0 0
    %1311 = vmatpush1.bf16.msra.mxu0 %v549
    %1312 = vmatprep.subr.bf16.mxu0 0
    %1313 = vmatpush1.bf16.msra.mxu0 %v548
    %1314 = vmatprep.subr.bf16.mxu0 0
    %1315 = vmatpush1.bf16.msra.mxu0 %v547
    %1316 = vmatprep.subr.bf16.mxu0 0
    %1317 = vmatpush1.bf16.msra.mxu0 %v546
    %1318 = vmatprep.subr.bf16.mxu0 0
    %1319 = vmatpush1.bf16.msra.mxu0 %v545
    %1320 = vmatprep.subr.bf16.mxu0 0
    %1321 = vmatpush1.bf16.msra.mxu0 %v544
    %1322 = vmatprep.subr.bf16.mxu0 0
    %1323 = vmatpush1.bf16.msra.mxu0 %v543
    %1324 = vmatprep.subr.bf16.mxu0 0
    %1325 = vmatpush1.bf16.msra.mxu0 %v542
    %1326 = vmatprep.subr.bf16.mxu0 0
    %1327 = vmatpush2.bf16.msra.mxu0 %v557
    %1328 = vmatprep.subr.bf16.mxu0 0
    %1329 = vmatpush2.bf16.msra.mxu0 %v556
    %1330 = vmatprep.subr.bf16.mxu0 0
    %1331 = vmatpush2.bf16.msra.mxu0 %v555
    %1332 = vmatprep.subr.bf16.mxu0 0
    %1333 = vmatpush2.bf16.msra.mxu0 %v554
    %1334 = vmatprep.subr.bf16.mxu0 0
    %1335 = vmatpush2.bf16.msra.mxu0 %v553
    %1336 = vmatprep.subr.bf16.mxu0 0
    %1337 = vmatpush2.bf16.msra.mxu0 %v552
    %1338 = vmatprep.subr.bf16.mxu0 0
    %1339 = vmatpush2.bf16.msra.mxu0 %v551
    %1340 = vmatprep.subr.bf16.mxu0 0
    %1341 = vmatpush2.bf16.msra.mxu0 %v550
    %1342 = vmatprep.mubr.bf16.mxu0 %v1189
    %1343 = vmatmul.mubr.bf16.gmra.mxu0 %v1188
    %v1344 = vpop.f32.mrf.mxu0
    %v1345 = vadd.f32 %v1305, %v1344
    %v1346 = vpop.f32.mrf.mxu0
    %v1347 = vpop.f32.mrf.mxu0
    %v1348 = vpop.f32.mrf.mxu0
    %1349 = vdwg.mxu0
    %v1350 = vmax.f32 %v1345, 0.0
    %v1351 = vpack.c.bf16 %v1350, %v1350
    %1352 = vmatprep.subr.bf16.mxu0 0
    %1353 = vmatpush1.bf16.msra.mxu0 %v829
    %1354 = vmatprep.subr.bf16.mxu0 0
    %1355 = vmatpush1.bf16.msra.mxu0 %v828
    %1356 = vmatprep.subr.bf16.mxu0 0
    %1357 = vmatpush1.bf16.msra.mxu0 %v827
    %1358 = vmatprep.subr.bf16.mxu0 0
    %1359 = vmatpush1.bf16.msra.mxu0 %v826
    %1360 = vmatprep.subr.bf16.mxu0 0
    %1361 = vmatpush1.bf16.msra.mxu0 %v825
    %1362 = vmatprep.subr.bf16.mxu0 0
    %1363 = vmatpush1.bf16.msra.mxu0 %v824
    %1364 = vmatprep.subr.bf16.mxu0 0
    %1365 = vmatpush1.bf16.msra.mxu0 %v823
    %1366 = vmatprep.subr.bf16.mxu0 0
    %1367 = vmatpush1.bf16.msra.mxu0 %v822
    %1368 = vmatprep.subr.bf16.mxu0 0
    %1369 = vmatpush2.bf16.msra.mxu0 0
    %1370 = vmatprep.subr.bf16.mxu0 0
    %1371 = vmatpush2.bf16.msra.mxu0 0
    %1372 = vmatprep.subr.bf16.mxu0 0
    %1373 = vmatpush2.bf16.msra.mxu0 0
    %1374 = vmatprep.subr.bf16.mxu0 0
    %1375 = vmatpush2.bf16.msra.mxu0 0
    %1376 = vmatprep.subr.bf16.mxu0 0
    %1377 = vmatpush2.bf16.msra.mxu0 0
    %1378 = vmatprep.subr.bf16.mxu0 0
    %1379 = vmatpush2.bf16.msra.mxu0 0
    %1380 = vmatprep.subr.bf16.mxu0 0
    %1381 = vmatpush2.bf16.msra.mxu0 0
    %1382 = vmatprep.subr.bf16.mxu0 0
    %1383 = vmatpush2.bf16.msra.mxu0 0
    %1384 = vmatprep.mubr.bf16.mxu0 0
    %1385 = vmatmul.mubr.bf16.gmra.mxu0 %v1351
    %v1386 = vpop.f32.mrf.mxu0
    %v1387 = vadd.f32 %v788, %v1386
    %v1388 = vpop.f32.mrf.mxu0
    %v1389 = vpop.f32.mrf.mxu0
    %v1390 = vpop.f32.mrf.mxu0
    %1391 = vdwg.mxu0
    %1392 = vst [vmem:[#allocation6] sm:$0x3] %v1387
    // Predicated region
    $region30: #{triplet_net.1} parent=1 // pred_check
      _
    $region31: #{triplet_net.1} parent=1 // pred_check_branch
      %1394 = sbr.rel (0) target = $region33
    $region32: #{triplet_net.1} parent=1 // pred_region
      %s1396 = ssub.s32 32, 32
      %1397 = vsyncadd [#allocation3], %s1396
      %s1399 = sshll.u32 [#allocation2], 4
      %s1400 = int_to_ptr.vmem [resolvable:$true] %s1399
      %1402 = dma.vmem_to_hbm [thread:$0]  %s1400, 32, %s7, [#allocation3]
    $region33: #{triplet_net.1} parent=1 // pred_fallthru
      _
    // Predicated region
    $region34: #{triplet_net.1} parent=1 // pred_check
      _
    $region35: #{triplet_net.1} parent=1 // pred_check_branch
      %1404 = sbr.rel (0) target = $region37
    $region36: #{triplet_net.1} parent=1 // pred_region
      %s1406 = ssub.s32 32, 32
      %1407 = vsyncadd [#allocation5], %s1406
      %s1409 = sshll.u32 [#allocation4], 4
      %s1410 = int_to_ptr.vmem [resolvable:$true] %s1409
      %1412 = dma.vmem_to_hbm [thread:$0]  %s1410, 32, %s8, [#allocation5]
    $region37: #{triplet_net.1} parent=1 // pred_fallthru
      _
    // Predicated region
    $region38: #{triplet_net.1} parent=1 // pred_check
      _
    $region39: #{triplet_net.1} parent=1 // pred_check_branch
      %1414 = sbr.rel (0) target = $region41
    $region40: #{triplet_net.1} parent=1 // pred_region
      %s1416 = ssub.s32 32, 32
      %1417 = vsyncadd [#allocation5], %s1416
      %s1419 = sshll.u32 [#allocation6], 4
      %s1420 = int_to_ptr.vmem [resolvable:$true] %s1419
      %1422 = dma.vmem_to_hbm [thread:$0]  %s1420, 32, %s9, [#allocation5]
    $region41: #{triplet_net.1} parent=1 // pred_fallthru
      _
    // Predicated region
    $region42: #{triplet_net.1} parent=1 // pred_check
      _
    $region43: #{triplet_net.1} parent=1 // pred_check_branch
      %1424 = sbr.rel (0) target = $region45
    $region44: #{triplet_net.1} parent=1 // pred_region
      %1425 = dma.done [#allocation3], 32
    $region45: #{triplet_net.1} parent=1 // pred_fallthru
      _
    // Predicated region
    $region46: #{triplet_net.1} parent=1 // pred_check
      _
    $region47: #{triplet_net.1} parent=1 // pred_check_branch
      %1427 = sbr.rel (0) target = $region49
    $region48: #{triplet_net.1} parent=1 // pred_region
      %1428 = dma.done [#allocation5], 32
    $region49: #{triplet_net.1} parent=1 // pred_fallthru
      _
    // Predicated region
    $region50: #{triplet_net.1} parent=1 // pred_check
      _
    $region51: #{triplet_net.1} parent=1 // pred_check_branch
      %1430 = sbr.rel (0) target = $region53
    $region52: #{triplet_net.1} parent=1 // pred_region
      %1431 = dma.done [#allocation5], 32
    $region53: #{triplet_net.1} parent=1 // pred_fallthru
      _
    %1432 = vsyncpa [#allocation3], 1
    %1433 = vsyncpa [#allocation5], 1

</llo_original>
